<compile_context>
chip_gen: v7x
topology: tpu7x:2x2x1
jax: 0.10.0
libtpu: 0.0.40
codegen_flags: <defaults>
</compile_context>

<pallas_src>
import functools

import jax
import jax.numpy as jnp
from jax.experimental import pallas as pl
from jax.experimental.pallas import tpu as pltpu


# ----------------------------- Pallas kernel ------------------------------- #
def _appnp_kernel(x_ref, w1_ref, b1_ref, w2_ref, b2_ref, adj_ref, out_ref,
                  z0_ref, z_ref, *, K: int, alpha: float):
    k = pl.program_id(0)

    # Step 0: lin1 + ReLU + lin2, all feature-major, f32.
    @pl.when(k == 0)
    def _init():
        h = jnp.dot(w1_ref[...], x_ref[...],
                    preferred_element_type=jnp.float32) + b1_ref[...]
        h = jnp.maximum(h, 0.0)                                   # (H, N)
        z0 = jnp.dot(w2_ref[...], h,
                     preferred_element_type=jnp.float32) + b2_ref[...]  # (C, N)
        z0_ref[...] = z0
        z_ref[...] = z0

    # One APPNP propagation step per grid iteration.
    # adj_ref already holds (1 - alpha) * A_hat in bf16; A_hat is symmetric so
    #   ((1-a) A_hat @ z)^T == z^T @ ((1-a) A_hat).
    z_bf16 = z_ref[...].astype(jnp.bfloat16)                      # (C, N)
    az = jnp.dot(z_bf16, adj_ref[...],
                 preferred_element_type=jnp.float32)              # (C, N)
    z_ref[...] = az + alpha * z0_ref[...]

    # Last step: numerically-stable log_softmax over the class (sublane) axis.
    @pl.when(k == K - 1)
    def _finalize():
        z = z_ref[...]
        m = jnp.max(z, axis=0, keepdims=True)                     # (1, N)
        s = z - m
        lse = jnp.log(jnp.sum(jnp.exp(s), axis=0, keepdims=True))
        out_ref[...] = s - lse                                    # (C, N)


def appnp_forward(x, w1, b1, w2, b2, adj_norm, *, K=10, alpha=0.1):
    """APPNP forward.

    x:(N,F) f32, w1:(H,F), b1:(H,), w2:(C,H), b2:(C,) (torch Linear layout),
    adj_norm:(N,N) f32 symmetric-normalized adjacency.  Returns (N,C) f32
    log-probabilities.
    """
    N, F = x.shape
    H = w1.shape[0]
    C = w2.shape[0]

    # Wrapper-side layout / precision prep (plain XLA, one-time cost):
    xT = x.T                                                     # (F, N)
    b1c = b1.reshape(H, 1)
    b2c = b2.reshape(C, 1)
    adj_scaled = ((1.0 - alpha) * adj_norm).astype(jnp.bfloat16)  # (N, N) bf16

    # VMEM-resident footprint: inputs + output + z0/z scratch.
    resident_bytes = (
        F * N * 4 + H * F * 4 + H * 4 + C * H * 4 + C * 4        # x + params
        + N * N * 2                                              # adj (bf16)
        + C * N * 4                                              # output
        + 2 * C * N * 4                                          # z0, z scratch
    )
    vmem_limit = int(min(max(2 * resident_bytes, 32 << 20), 100 << 20))

    flops = 2.0 * N * F * H + 2.0 * N * H * C + 2.0 * K * C * N * N
    cost = pl.CostEstimate(
        flops=int(flops),
        transcendentals=int(N * C + N),
        bytes_accessed=int(N * N * 2 + (N * F + N * C) * 4
                           + (H * F + H + C * H + C) * 4),
    )

    const0_2d = lambda k: (0, 0)  # resident: same block across all K steps

    out_t = pl.pallas_call(
        functools.partial(_appnp_kernel, K=K, alpha=alpha),
        out_shape=jax.ShapeDtypeStruct((C, N), jnp.float32),
        grid_spec=pltpu.PrefetchScalarGridSpec(
            num_scalar_prefetch=0,
            grid=(K,),
            in_specs=[
                pl.BlockSpec((F, N), const0_2d),    # xT
                pl.BlockSpec((H, F), const0_2d),    # W1
                pl.BlockSpec((H, 1), const0_2d),    # b1
                pl.BlockSpec((C, H), const0_2d),    # W2
                pl.BlockSpec((C, 1), const0_2d),    # b2
                pl.BlockSpec((N, N), const0_2d),    # (1-alpha) * A_hat, bf16
            ],
            out_specs=pl.BlockSpec((C, N), const0_2d),
            scratch_shapes=[
                pltpu.VMEM((C, N), jnp.float32),    # z0T
                pltpu.VMEM((C, N), jnp.float32),    # zT carry
            ],
        ),
        compiler_params=pltpu.CompilerParams(
            dimension_semantics=("arbitrary",),      # K steps are sequential
            vmem_limit_bytes=vmem_limit,
        ),
        cost_estimate=cost,
    )(xT, w1, b1c, w2, b2c, adj_scaled)

    return out_t.T                                               # (N, C)


# ------------------------------ glue / setup -------------------------------- #
def build_normalized_adj(edge_index, num_nodes):
    """Dense GCN-normalized adjacency with self loops: D^-1/2 (A+I) D^-1/2.

    Existing self-loops keep weight 1.0 (matches add_remaining_self_loops).
    """
    src, dst = edge_index[0], edge_index[1]
    A = jnp.zeros((num_nodes, num_nodes), jnp.float32)
    A = A.at[src, dst].set(1.0)
    A = jnp.maximum(A, A.T)                                        # symmetrize
    A = jnp.maximum(A, jnp.eye(num_nodes, dtype=jnp.float32))      # self loops
    deg = jnp.sum(A, axis=1)
    d_inv_sqrt = jnp.where(deg > 0, 1.0 / jnp.sqrt(deg), 0.0)
    return A * d_inv_sqrt[:, None] * d_inv_sqrt[None, :]


def init_linear(key, in_f, out_f):
    """Deterministic PyTorch-Linear-style init (uniform +-1/sqrt(fan_in))."""
    kw, kb = jax.random.split(key)
    bound = 1.0 / jnp.sqrt(jnp.float32(in_f))
    w = jax.random.uniform(kw, (out_f, in_f), jnp.float32, -bound, bound)
    b = jax.random.uniform(kb, (out_f,), jnp.float32, -bound, bound)
    return w, b


def reference_forward(x, w1, b1, w2, b2, adj, K=10, alpha=0.1):
    h = jnp.maximum(x @ w1.T + b1, 0.0)
    z0 = h @ w2.T + b2
    z = z0
    for _ in range(K):
        z = (1.0 - alpha) * (adj @ z) + alpha * z0
    return jax.nn.log_softmax(z, axis=1)


if __name__ == "__main__":
    # small, module-consistent shapes (N lane-dense multiple of 128)
    N_NODES, NFEAT, NHID, NCLASS = 256, 32, 32, 16
    K, ALPHA = 10, 0.1

    key = jax.random.PRNGKey(0)
    k_x, k_e, k_l1, k_l2 = jax.random.split(key, 4)

    x = jax.random.normal(k_x, (N_NODES, NFEAT), jnp.float32)

    # random edge list (2, E)
    E = 1024
    edge_index = jax.random.randint(k_e, (2, E), 0, N_NODES, jnp.int32)
    adj_norm = build_normalized_adj(edge_index, N_NODES)

    # deterministic parameter init (torch Linear shapes: W:(out,in), b:(out,))
    w1, b1 = init_linear(k_l1, NFEAT, NHID)
    w2, b2 = init_linear(k_l2, NHID, NCLASS)

    out = appnp_forward(x, w1, b1, w2, b2, adj_norm, K=K, alpha=ALPHA)
    out = jax.block_until_ready(out)

    ref = reference_forward(x, w1, b1, w2, b2, adj_norm, K=K, alpha=ALPHA)
    assert out.shape == (N_NODES, NCLASS)
    # bf16 adjacency / propagation vs f32 reference -> loosened tolerance
    max_diff = float(jnp.max(jnp.abs(out - ref)))
    assert jnp.allclose(out, ref, atol=5e-2, rtol=5e-2), (
        f"mismatch vs JAX reference (max abs diff {max_diff:.3e})")

    print("KERNEL_OK")
</pallas_src>

<mosaic_0001>
module attributes {stable_mosaic.version = 11 : i64} {
  func.func @_appnp_kernel(%arg0: i32, %arg1: memref<32x256xf32, #tpu.memory_space<vmem>>, %arg2: memref<32x32xf32, #tpu.memory_space<vmem>>, %arg3: memref<32x1xf32, #tpu.memory_space<vmem>>, %arg4: memref<16x32xf32, #tpu.memory_space<vmem>>, %arg5: memref<16x1xf32, #tpu.memory_space<vmem>>, %arg6: memref<256x256xbf16, #tpu.memory_space<vmem>>, %arg7: memref<16x256xf32, #tpu.memory_space<vmem>>, %arg8: memref<16x256xf32, #tpu.memory_space<vmem>>, %arg9: memref<16x256xf32, #tpu.memory_space<vmem>>) attributes {dimension_semantics = [#tpu.dimension_semantics<arbitrary>], iteration_bounds = array<i64: 10>, scalar_prefetch = 0 : i64, scratch_operands = 2 : i64, tpu.core_type = #tpu.core_type<tc>, window_params = [{pipeline_mode = #tpu.pipeline_mode<synchronous>, transform_indices = @transform_0, window_bounds = array<i64: 32, 256>}, {pipeline_mode = #tpu.pipeline_mode<synchronous>, transform_indices = @transform_1, window_bounds = array<i64: 32, 32>}, {pipeline_mode = #tpu.pipeline_mode<synchronous>, transform_indices = @transform_2, window_bounds = array<i64: 32, 1>}, {pipeline_mode = #tpu.pipeline_mode<synchronous>, transform_indices = @transform_3, window_bounds = array<i64: 16, 32>}, {pipeline_mode = #tpu.pipeline_mode<synchronous>, transform_indices = @transform_4, window_bounds = array<i64: 16, 1>}, {pipeline_mode = #tpu.pipeline_mode<synchronous>, transform_indices = @transform_5, window_bounds = array<i64: 256, 256>}, {pipeline_mode = #tpu.pipeline_mode<synchronous>, transform_indices = @transform_6, window_bounds = array<i64: 16, 256>}]} {
    %c0_i32 = arith.constant 0 : i32
    %0 = arith.cmpi eq, %arg0, %c0_i32 : i32
    %1 = arith.extui %0 : i1 to i32
    %c0_i32_0 = arith.constant 0 : i32
    %2 = arith.cmpi ne, %1, %c0_i32_0 : i32
    scf.if %2 {
      %c0_10 = arith.constant 0 : index
      %c0_11 = arith.constant 0 : index
      %15 = vector.load %arg2[%c0_10, %c0_11] : memref<32x32xf32, #tpu.memory_space<vmem>>, vector<32x32xf32>
      %c0_12 = arith.constant 0 : index
      %c0_13 = arith.constant 0 : index
      %16 = vector.load %arg1[%c0_12, %c0_13] : memref<32x256xf32, #tpu.memory_space<vmem>>, vector<32x256xf32>
      %cst_14 = arith.constant dense<0.000000e+00> : vector<32x256xf32>
      %17 = tpu.matmul %15, %16, %cst_14 {dimension_numbers = #tpu.dot_dimension_numbers<[1], [0], [0], [1], [0, 0, 1, 1], [], []>} : vector<32x32xf32>, vector<32x256xf32>, vector<32x256xf32> -> vector<32x256xf32>
      %c0_15 = arith.constant 0 : index
      %c0_16 = arith.constant 0 : index
      %18 = vector.load %arg3[%c0_15, %c0_16] : memref<32x1xf32, #tpu.memory_space<vmem>>, vector<32x1xf32>
      %19 = vector.broadcast %18 : vector<32x1xf32> to vector<32x256xf32>
      %20 = arith.addf %17, %19 : vector<32x256xf32>
      %cst_17 = arith.constant 0.000000e+00 : f32
      %21 = vector.broadcast %cst_17 : f32 to vector<32x256xf32>
      %22 = arith.maximumf %20, %21 : vector<32x256xf32>
      %c0_18 = arith.constant 0 : index
      %c0_19 = arith.constant 0 : index
      %23 = vector.load %arg4[%c0_18, %c0_19] : memref<16x32xf32, #tpu.memory_space<vmem>>, vector<16x32xf32>
      %cst_20 = arith.constant dense<0.000000e+00> : vector<16x256xf32>
      %24 = tpu.matmul %23, %22, %cst_20 {dimension_numbers = #tpu.dot_dimension_numbers<[1], [0], [0], [1], [0, 0, 1, 1], [], []>} : vector<16x32xf32>, vector<32x256xf32>, vector<16x256xf32> -> vector<16x256xf32>
      %c0_21 = arith.constant 0 : index
      %c0_22 = arith.constant 0 : index
      %25 = vector.load %arg5[%c0_21, %c0_22] : memref<16x1xf32, #tpu.memory_space<vmem>>, vector<16x1xf32>
      %26 = vector.broadcast %25 : vector<16x1xf32> to vector<16x256xf32>
      %27 = arith.addf %24, %26 : vector<16x256xf32>
      %c0_23 = arith.constant 0 : index
      %c0_24 = arith.constant 0 : index
      %28 = vector.load %arg8[%c0_23, %c0_24] : memref<16x256xf32, #tpu.memory_space<vmem>>, vector<16x256xf32>
      tpu.vector_store %arg8[%c0_23, %c0_24], %27 {strides = array<i32>} : memref<16x256xf32, #tpu.memory_space<vmem>>, vector<16x256xf32>,
      %c0_25 = arith.constant 0 : index
      %c0_26 = arith.constant 0 : index
      %29 = vector.load %arg9[%c0_25, %c0_26] : memref<16x256xf32, #tpu.memory_space<vmem>>, vector<16x256xf32>
      tpu.vector_store %arg9[%c0_25, %c0_26], %27 {strides = array<i32>} : memref<16x256xf32, #tpu.memory_space<vmem>>, vector<16x256xf32>,
    } else {
    }
    %c0 = arith.constant 0 : index
    %c0_1 = arith.constant 0 : index
    %3 = vector.load %arg9[%c0, %c0_1] : memref<16x256xf32, #tpu.memory_space<vmem>>, vector<16x256xf32>
    %4 = arith.truncf %3 : vector<16x256xf32> to vector<16x256xbf16>
    %c0_2 = arith.constant 0 : index
    %c0_3 = arith.constant 0 : index
    %5 = vector.load %arg6[%c0_2, %c0_3] : memref<256x256xbf16, #tpu.memory_space<vmem>>, vector<256x256xbf16>
    %cst = arith.constant dense<0.000000e+00> : vector<16x256xf32>
    %6 = tpu.matmul %4, %5, %cst {dimension_numbers = #tpu.dot_dimension_numbers<[1], [0], [0], [1], [0, 0, 1, 1], [], []>} : vector<16x256xbf16>, vector<256x256xbf16>, vector<16x256xf32> -> vector<16x256xf32>
    %c0_4 = arith.constant 0 : index
    %c0_5 = arith.constant 0 : index
    %7 = vector.load %arg8[%c0_4, %c0_5] : memref<16x256xf32, #tpu.memory_space<vmem>>, vector<16x256xf32>
    %cst_6 = arith.constant 1.000000e-01 : f32
    %8 = vector.broadcast %cst_6 : f32 to vector<16x256xf32>
    %9 = arith.mulf %8, %7 : vector<16x256xf32>
    %10 = arith.addf %6, %9 : vector<16x256xf32>
    %c0_7 = arith.constant 0 : index
    %c0_8 = arith.constant 0 : index
    %11 = vector.load %arg9[%c0_7, %c0_8] : memref<16x256xf32, #tpu.memory_space<vmem>>, vector<16x256xf32>
    tpu.vector_store %arg9[%c0_7, %c0_8], %10 {strides = array<i32>} : memref<16x256xf32, #tpu.memory_space<vmem>>, vector<16x256xf32>,
    %c9_i32 = arith.constant 9 : i32
    %12 = arith.cmpi eq, %arg0, %c9_i32 : i32
    %13 = arith.extui %12 : i1 to i32
    %c0_i32_9 = arith.constant 0 : i32
    %14 = arith.cmpi ne, %13, %c0_i32_9 : i32
    scf.if %14 {
      %c0_10 = arith.constant 0 : index
      %c0_11 = arith.constant 0 : index
      %15 = vector.load %arg9[%c0_10, %c0_11] : memref<16x256xf32, #tpu.memory_space<vmem>>, vector<16x256xf32>
      %cst_12 = arith.constant dense<0xFF800000> : vector<256xf32>
      %16 = vector.multi_reduction <maximumf>, %15, %cst_12 [0] : vector<16x256xf32> to vector<256xf32>
      %17 = vector.shape_cast %16 : vector<256xf32> to vector<1x256xf32>
      %18 = vector.broadcast %17 : vector<1x256xf32> to vector<16x256xf32>
      %19 = arith.subf %15, %18 : vector<16x256xf32>
      %20 = math.exp %19 : vector<16x256xf32>
      %cst_13 = arith.constant dense<0.000000e+00> : vector<256xf32>
      %21 = vector.multi_reduction <add>, %20, %cst_13 [0] : vector<16x256xf32> to vector<256xf32>
      %22 = vector.shape_cast %21 : vector<256xf32> to vector<1x256xf32>
      %23 = math.log %22 : vector<1x256xf32>
      %24 = vector.broadcast %23 : vector<1x256xf32> to vector<16x256xf32>
      %25 = arith.subf %19, %24 : vector<16x256xf32>
      %c0_14 = arith.constant 0 : index
      %c0_15 = arith.constant 0 : index
      %26 = vector.load %arg7[%c0_14, %c0_15] : memref<16x256xf32, #tpu.memory_space<vmem>>, vector<16x256xf32>
      tpu.vector_store %arg7[%c0_14, %c0_15], %25 {strides = array<i32>} : memref<16x256xf32, #tpu.memory_space<vmem>>, vector<16x256xf32>,
    } else {
    }
    return
  }
  func.func @transform_0(%arg0: i32) -> (i32, i32) {
    %c0_i32 = arith.constant 0 : i32
    %c0_i32_0 = arith.constant 0 : i32
    %c0_i32_1 = arith.constant 0 : i32
    return %c0_i32, %c0_i32_0 : i32, i32
  }
  func.func @transform_1(%arg0: i32) -> (i32, i32) {
    %c0_i32 = arith.constant 0 : i32
    %c0_i32_0 = arith.constant 0 : i32
    %c0_i32_1 = arith.constant 0 : i32
    return %c0_i32, %c0_i32_0 : i32, i32
  }
  func.func @transform_2(%arg0: i32) -> (i32, i32) {
    %c0_i32 = arith.constant 0 : i32
    %c0_i32_0 = arith.constant 0 : i32
    %c0_i32_1 = arith.constant 0 : i32
    return %c0_i32, %c0_i32_0 : i32, i32
  }
  func.func @transform_3(%arg0: i32) -> (i32, i32) {
    %c0_i32 = arith.constant 0 : i32
    %c0_i32_0 = arith.constant 0 : i32
    %c0_i32_1 = arith.constant 0 : i32
    return %c0_i32, %c0_i32_0 : i32, i32
  }
  func.func @transform_4(%arg0: i32) -> (i32, i32) {
    %c0_i32 = arith.constant 0 : i32
    %c0_i32_0 = arith.constant 0 : i32
    %c0_i32_1 = arith.constant 0 : i32
    return %c0_i32, %c0_i32_0 : i32, i32
  }
  func.func @transform_5(%arg0: i32) -> (i32, i32) {
    %c0_i32 = arith.constant 0 : i32
    %c0_i32_0 = arith.constant 0 : i32
    %c0_i32_1 = arith.constant 0 : i32
    return %c0_i32, %c0_i32_0 : i32, i32
  }
  func.func @transform_6(%arg0: i32) -> (i32, i32) {
    %c0_i32 = arith.constant 0 : i32
    %c0_i32_0 = arith.constant 0 : i32
    %c0_i32_1 = arith.constant 0 : i32
    return %c0_i32, %c0_i32_0 : i32, i32
  }
}

</mosaic_0001>

<llo_original>
// kernel: tpu_custom_call.1
$region0: #{tpu_custom_call.1}
  #allocation0 [shape = 'u32[]', space=smem, size = 0x4, offset = 0x4, fixed_abs, tag = 'smem constant byte address 0x4 - core index']
  #allocation1 [shape = 'u32[144,128]{1,0:T(1,128)}', space=vmem, size = 0x12000, scoped, tag = 'internal scratch']
  #allocation2 [shape = 'f32[16,256]{1,0:T(8,128)}', space=vmem, size = 0x4000, scoped, tag = 'scratch operand']
  #allocation3 [shape = 'f32[16,256]{1,0:T(8,128)}', space=vmem, size = 0x4000, scoped, tag = 'scratch operand']
  %s0 = inlined_call_operand.hbm [shape: f32[32,256], index: 0, kind: input, shape index: {}]
  %s1 = inlined_call_operand.vmem [shape: f32[32,32], index: 1, kind: input, shape index: {}]
  %s2 = inlined_call_operand.vmem [shape: f32[32,1], index: 2, kind: input, shape index: {}]
  %s3 = inlined_call_operand.vmem [shape: f32[16,32], index: 3, kind: input, shape index: {}]
  %s4 = inlined_call_operand.vmem [shape: f32[16,1], index: 4, kind: input, shape index: {}]
  %s5 = inlined_call_operand.hbm [shape: bf16[256,256], index: 5, kind: input, shape index: {}]
  %s6 = inlined_call_operand.hbm [shape: f32[16,256], index: 6, kind: output, shape index: {}]
  %s7 = sld [smem:[#allocation0]]
  $region73: #{tpu_custom_call.1} parent=0
    _
  %s9 = ssub.s32 1, %s7
  %s10 = scalar_select 0, %s9, %s7
  $region1: #{tpu_custom_call.1} parent=0
    #allocation4 [shape = 'u8[32768]{0}', space=vmem, size = 0x8000, scoped, tag = 'input window, operand 0, single buffered']
    #allocation5 [shape = 's32[2]{0}', space=sflag, size = 0x8, scoped, tag = 'scoped memory for tpu_custom_call.1']
    #allocation6 [shape = 's32[2]{0}', space=sflag, size = 0x8, scoped, tag = 'scoped memory for tpu_custom_call.1']
    #allocation7 [shape = 'u8[131072]{0}', space=vmem, size = 0x20000, scoped, tag = 'input window, operand 5, single buffered']
    #allocation8 [shape = 's32[1]{0}', space=sflag, size = 0x4, scoped, tag = 'scoped memory for tpu_custom_call.1']
    #allocation9 [shape = 'u8[16384]{0}', space=vmem, size = 0x4000, scoped, tag = 'output window, operand 0, single buffered']
    %11 = vsyncpa [#allocation5], 0
    %12 = vsyncpa [#allocation8], 0
    %13 = vsyncpa [#allocation6], 0
    loop: start=0, step=1, limit=12
    $region2: #{tpu_custom_call.1} parent=1 // loop_pre_header
      _
    $region3: #{tpu_custom_call.1} parent=1 // loop_header
      %s15 = sphi 0, %s19
      %p16 = scmp.ge.s32.totalorder %s15, 12
      %s23 = sphi 0, %s23
      %s25 = sphi 0, %s23
      %s26 = sphi 0, %s25
      %s40 = sphi 0, %s26
      %s44 = sphi 0, %s44
      %s46 = sphi 0, %s44
      %s47 = sphi 0, %s46
      %s61 = sphi 0, %s47
      %s65 = sphi 0, %s65
      %s67 = sphi 0, %s65
      %s68 = sphi 0, %s67
      %s82 = sphi 0, %s68
      %s86 = sphi 0, %s86
      %s88 = sphi 0, %s86
      %s89 = sphi 0, %s88
      %s103 = sphi 0, %s89
      %s107 = sphi 0, %s107
      %s109 = sphi 0, %s107
      %s110 = sphi 0, %s109
      %s124 = sphi 0, %s110
      %s128 = sphi 0, %s128
      %s130 = sphi 0, %s128
      %s131 = sphi 0, %s130
      %s145 = sphi 0, %s131
      %s149 = sphi 0, %s149
      %s151 = sphi 0, %s149
      %s152 = sphi 0, %s151
      %s166 = sphi 0, %s152
    $region4: #{tpu_custom_call.1} parent=1 // loop_header_branch
      %18 = sbr.rel (%p16) target = $region8
    $region5: #{tpu_custom_call.1} parent=1 // loop_body
      %s20 = ssub.s32 %s15, 1
      %s21 = ssub.s32 %s15, 2
      %s22 = sadd.s32 %s15, 1
      %s24 = sadd.s32 %s23, 1
      %p27 = scmp.eq.s32.totalorder %s15, 9
      %p28 = scmp.ne.s32.totalorder %s23, %s25
      %p29 = scmp.eq.s32.totalorder %s15, 0
      %p30 = por %p28, %p29
      %p31 = scmp.ne.s32.totalorder %s23, %s25
      %p32 = scmp.eq.s32.totalorder %s20, 9
      %p33 = por %p31, %p32
      %p34 = scmp.ne.s32.totalorder %s25, %s26
      %p35 = scmp.eq.s32.totalorder %s20, 0
      %p36 = por %p34, %p35
      %p37 = scmp.ne.s32.totalorder %s25, %s26
      %p38 = scmp.eq.s32.totalorder %s21, 9
      %p39 = por %p37, %p38
      %p41 = scmp.ne.s32.totalorder %s26, %s40
      %p42 = scmp.eq.s32.totalorder %s21, 0
      %p43 = por %p41, %p42
      %s45 = sadd.s32 %s44, 1
      %p48 = scmp.eq.s32.totalorder %s15, 9
      %p49 = scmp.ne.s32.totalorder %s44, %s46
      %p50 = scmp.eq.s32.totalorder %s15, 0
      %p51 = por %p49, %p50
      %p52 = scmp.ne.s32.totalorder %s44, %s46
      %p53 = scmp.eq.s32.totalorder %s20, 9
      %p54 = por %p52, %p53
      %p55 = scmp.ne.s32.totalorder %s46, %s47
      %p56 = scmp.eq.s32.totalorder %s20, 0
      %p57 = por %p55, %p56
      %p58 = scmp.ne.s32.totalorder %s46, %s47
      %p59 = scmp.eq.s32.totalorder %s21, 9
      %p60 = por %p58, %p59
      %p62 = scmp.ne.s32.totalorder %s47, %s61
      %p63 = scmp.eq.s32.totalorder %s21, 0
      %p64 = por %p62, %p63
      %s66 = sadd.s32 %s65, 1
      %p69 = scmp.eq.s32.totalorder %s15, 9
      %p70 = scmp.ne.s32.totalorder %s65, %s67
      %p71 = scmp.eq.s32.totalorder %s15, 0
      %p72 = por %p70, %p71
      %p73 = scmp.ne.s32.totalorder %s65, %s67
      %p74 = scmp.eq.s32.totalorder %s20, 9
      %p75 = por %p73, %p74
      %p76 = scmp.ne.s32.totalorder %s67, %s68
      %p77 = scmp.eq.s32.totalorder %s20, 0
      %p78 = por %p76, %p77
      %p79 = scmp.ne.s32.totalorder %s67, %s68
      %p80 = scmp.eq.s32.totalorder %s21, 9
      %p81 = por %p79, %p80
      %p83 = scmp.ne.s32.totalorder %s68, %s82
      %p84 = scmp.eq.s32.totalorder %s21, 0
      %p85 = por %p83, %p84
      %s87 = sadd.s32 %s86, 1
      %p90 = scmp.eq.s32.totalorder %s15, 9
      %p91 = scmp.ne.s32.totalorder %s86, %s88
      %p92 = scmp.eq.s32.totalorder %s15, 0
      %p93 = por %p91, %p92
      %p94 = scmp.ne.s32.totalorder %s86, %s88
      %p95 = scmp.eq.s32.totalorder %s20, 9
      %p96 = por %p94, %p95
      %p97 = scmp.ne.s32.totalorder %s88, %s89
      %p98 = scmp.eq.s32.totalorder %s20, 0
      %p99 = por %p97, %p98
      %p100 = scmp.ne.s32.totalorder %s88, %s89
      %p101 = scmp.eq.s32.totalorder %s21, 9
      %p102 = por %p100, %p101
      %p104 = scmp.ne.s32.totalorder %s89, %s103
      %p105 = scmp.eq.s32.totalorder %s21, 0
      %p106 = por %p104, %p105
      %s108 = sadd.s32 %s107, 1
      %p111 = scmp.eq.s32.totalorder %s15, 9
      %p112 = scmp.ne.s32.totalorder %s107, %s109
      %p113 = scmp.eq.s32.totalorder %s15, 0
      %p114 = por %p112, %p113
      %p115 = scmp.ne.s32.totalorder %s107, %s109
      %p116 = scmp.eq.s32.totalorder %s20, 9
      %p117 = por %p115, %p116
      %p118 = scmp.ne.s32.totalorder %s109, %s110
      %p119 = scmp.eq.s32.totalorder %s20, 0
      %p120 = por %p118, %p119
      %p121 = scmp.ne.s32.totalorder %s109, %s110
      %p122 = scmp.eq.s32.totalorder %s21, 9
      %p123 = por %p121, %p122
      %p125 = scmp.ne.s32.totalorder %s110, %s124
      %p126 = scmp.eq.s32.totalorder %s21, 0
      %p127 = por %p125, %p126
      %s129 = sadd.s32 %s128, 1
      %p132 = scmp.eq.s32.totalorder %s15, 9
      %p133 = scmp.ne.s32.totalorder %s128, %s130
      %p134 = scmp.eq.s32.totalorder %s15, 0
      %p135 = por %p133, %p134
      %p136 = scmp.ne.s32.totalorder %s128, %s130
      %p137 = scmp.eq.s32.totalorder %s20, 9
      %p138 = por %p136, %p137
      %p139 = scmp.ne.s32.totalorder %s130, %s131
      %p140 = scmp.eq.s32.totalorder %s20, 0
      %p141 = por %p139, %p140
      %p142 = scmp.ne.s32.totalorder %s130, %s131
      %p143 = scmp.eq.s32.totalorder %s21, 9
      %p144 = por %p142, %p143
      %p146 = scmp.ne.s32.totalorder %s131, %s145
      %p147 = scmp.eq.s32.totalorder %s21, 0
      %p148 = por %p146, %p147
      %s150 = sadd.s32 %s149, 1
      %p153 = scmp.eq.s32.totalorder %s15, 9
      %p154 = scmp.ne.s32.totalorder %s149, %s151
      %p155 = scmp.eq.s32.totalorder %s15, 0
      %p156 = por %p154, %p155
      %p157 = scmp.ne.s32.totalorder %s149, %s151
      %p158 = scmp.eq.s32.totalorder %s20, 9
      %p159 = por %p157, %p158
      %p160 = scmp.ne.s32.totalorder %s151, %s152
      %p161 = scmp.eq.s32.totalorder %s20, 0
      %p162 = por %p160, %p161
      %p163 = scmp.ne.s32.totalorder %s151, %s152
      %p164 = scmp.eq.s32.totalorder %s21, 9
      %p165 = por %p163, %p164
      %p167 = scmp.ne.s32.totalorder %s152, %s166
      %p168 = scmp.eq.s32.totalorder %s21, 0
      %p169 = por %p167, %p168
      %p170 = scmp.le.s32.totalorder 1, %s15
      %p171 = scmp.lt.s32.totalorder %s15, 11
      %p172 = pnand %p170, %p171
      %p173 = pneg %p172
      // Predicated region
      $region9: #{tpu_custom_call.1} parent=5 // pred_check
        _
      $region10: #{tpu_custom_call.1} parent=5 // pred_check_branch
        %175 = sbr.rel (%p172) target = $region12
      $region11: #{tpu_custom_call.1} parent=5 // pred_region
        %s176 = ssub.s32 %s15, 1
        // Predicated region
        $region13: #{tpu_custom_call.1} parent=11 // pred_check
          %p177 = pneg %p36
        $region14: #{tpu_custom_call.1} parent=11 // pred_check_branch
          %179 = sbr.rel (%p177) target = $region16
        $region15: #{tpu_custom_call.1} parent=11 // pred_region
          %s181 = ssub.s32 1024, 1024
          %182 = vsyncadd [#allocation5], %s181
          %s183 = sshll.u32 [#allocation4], 4
          %s184 = int_to_ptr.vmem [resolvable:$true] %s183
          %189 = dma.hbm_to_vmem [thread:$0]  %s0, 1024, %s184, [#allocation5], 256, 256, 16
        $region16: #{tpu_custom_call.1} parent=11 // pred_fallthru
          _
        // Predicated region
        $region17: #{tpu_custom_call.1} parent=11 // pred_check
          %p190 = pneg %p57
        $region18: #{tpu_custom_call.1} parent=11 // pred_check_branch
          %192 = sbr.rel (%p190) target = $region20
        $region19: #{tpu_custom_call.1} parent=11 // pred_region
          _
        $region20: #{tpu_custom_call.1} parent=11 // pred_fallthru
          _
        // Predicated region
        $region21: #{tpu_custom_call.1} parent=11 // pred_check
          %p193 = pneg %p78
        $region22: #{tpu_custom_call.1} parent=11 // pred_check_branch
          %195 = sbr.rel (%p193) target = $region24
        $region23: #{tpu_custom_call.1} parent=11 // pred_region
          _
        $region24: #{tpu_custom_call.1} parent=11 // pred_fallthru
          _
        // Predicated region
        $region25: #{tpu_custom_call.1} parent=11 // pred_check
          %p196 = pneg %p99
        $region26: #{tpu_custom_call.1} parent=11 // pred_check_branch
          %198 = sbr.rel (%p196) target = $region28
        $region27: #{tpu_custom_call.1} parent=11 // pred_region
          _
        $region28: #{tpu_custom_call.1} parent=11 // pred_fallthru
          _
        // Predicated region
        $region29: #{tpu_custom_call.1} parent=11 // pred_check
          %p199 = pneg %p120
        $region30: #{tpu_custom_call.1} parent=11 // pred_check_branch
          %201 = sbr.rel (%p199) target = $region32
        $region31: #{tpu_custom_call.1} parent=11 // pred_region
          _
        $region32: #{tpu_custom_call.1} parent=11 // pred_fallthru
          _
        // Predicated region
        $region33: #{tpu_custom_call.1} parent=11 // pred_check
          %p202 = pneg %p141
        $region34: #{tpu_custom_call.1} parent=11 // pred_check_branch
          %204 = sbr.rel (%p202) target = $region36
        $region35: #{tpu_custom_call.1} parent=11 // pred_region
          %s206 = ssub.s32 4096, 4096
          %207 = vsyncadd [#allocation8], %s206
          %s208 = sshll.u32 [#allocation7], 4
          %s209 = int_to_ptr.vmem [resolvable:$true] %s208
          %214 = dma.hbm_to_vmem [thread:$0]  %s5, 4096, %s209, [#allocation8], 128, 128, 8
        $region36: #{tpu_custom_call.1} parent=11 // pred_fallthru
          _
      $region12: #{tpu_custom_call.1} parent=5 // pred_fallthru
        _
      %p215 = scmp.lt.s32.totalorder %s15, 10
      // Predicated region
      $region37: #{tpu_custom_call.1} parent=5 // pred_check
        %p216 = pneg %p215
      $region38: #{tpu_custom_call.1} parent=5 // pred_check_branch
        %218 = sbr.rel (%p216) target = $region40
      $region39: #{tpu_custom_call.1} parent=5 // pred_region
        _
      $region40: #{tpu_custom_call.1} parent=5 // pred_fallthru
        _
      %p219 = scmp.le.s32.totalorder 1, %s15
      %p220 = scmp.lt.s32.totalorder %s15, 11
      %p221 = pnand %p219, %p220
      %p222 = pneg %p221
      // Predicated region
      $region41: #{tpu_custom_call.1} parent=5 // pred_check
        _
      $region42: #{tpu_custom_call.1} parent=5 // pred_check_branch
        %224 = sbr.rel (%p221) target = $region44
      $region43: #{tpu_custom_call.1} parent=5 // pred_region
        %s225 = ssub.s32 %s15, 1
        // Predicated region
        $region45: #{tpu_custom_call.1} parent=43 // pred_check
          %p226 = pneg %p36
        $region46: #{tpu_custom_call.1} parent=43 // pred_check_branch
          %228 = sbr.rel (%p226) target = $region48
        $region47: #{tpu_custom_call.1} parent=43 // pred_region
          %229 = dma.done [#allocation5], 1024
        $region48: #{tpu_custom_call.1} parent=43 // pred_fallthru
          _
        // Predicated region
        $region49: #{tpu_custom_call.1} parent=43 // pred_check
          %p230 = pneg %p141
        $region50: #{tpu_custom_call.1} parent=43 // pred_check_branch
          %232 = sbr.rel (%p230) target = $region52
        $region51: #{tpu_custom_call.1} parent=43 // pred_region
          %233 = dma.done [#allocation8], 4096
        $region52: #{tpu_custom_call.1} parent=43 // pred_fallthru
          _
        %p234 = pneg %p36
        %p235 = pneg %p33
        %p236 = pneg %p57
        %p237 = pneg %p54
        %p238 = pneg %p78
        %p239 = pneg %p75
        %p240 = pneg %p99
        %p241 = pneg %p96
        %p242 = pneg %p120
        %p243 = pneg %p117
        %p244 = pneg %p141
        %p245 = pneg %p138
        %p246 = pneg %p162
        %p247 = pneg %p159
        %p248 = scmp.eq.s32.totalorder %s20, 0
        // Predicated region
        $region53: #{tpu_custom_call.1} parent=43 // pred_check
          %p249 = pneg %p248
        $region54: #{tpu_custom_call.1} parent=43 // pred_check_branch
          %251 = sbr.rel (%p249) target = $region56
        $region55: #{tpu_custom_call.1} parent=43 // pred_region
          %v252 = vld [vmem:[%s1] sm:$0xff]
          %v253 = vld [vmem:[%s1 + $0x8] sm:$0xff]
          %v254 = vld [vmem:[%s1 + $0x10] sm:$0xff]
          %v255 = vld [vmem:[%s1 + $0x18] sm:$0xff]
          %v256 = vld [vmem:[#allocation4] sm:$0xff]
          %v257 = vld [vmem:[#allocation4 + $0x8] sm:$0xff]
          %v258 = vld [vmem:[#allocation4 + $0x10] sm:$0xff]
          %v259 = vld [vmem:[#allocation4 + $0x18] sm:$0xff]
          %v260 = vld [vmem:[#allocation4 + $0x20] sm:$0xff]
          %v261 = vld [vmem:[#allocation4 + $0x28] sm:$0xff]
          %v262 = vld [vmem:[#allocation4 + $0x30] sm:$0xff]
          %v263 = vld [vmem:[#allocation4 + $0x38] sm:$0xff]
          %v264 = vld [vmem:[%s2] sm:$0xff]
          %v265 = vld [vmem:[%s2 + $0x8] sm:$0xff]
          %v266 = vld [vmem:[%s2 + $0x10] sm:$0xff]
          %v267 = vld [vmem:[%s2 + $0x18] sm:$0xff]
          %269 = vset.pattern.permute.xlu0 0
          %270 = vperm.xlu0 %269, %v264
          %v271 = vpop.permute.xlu0 %270
          %274 = vset.pattern.permute.xlu0 0
          %275 = vperm.xlu0 %274, %v265
          %v276 = vpop.permute.xlu0 %275
          %279 = vset.pattern.permute.xlu0 0
          %280 = vperm.xlu0 %279, %v266
          %v281 = vpop.permute.xlu0 %280
          %284 = vset.pattern.permute.xlu0 0
          %285 = vperm.xlu0 %284, %v267
          %v286 = vpop.permute.xlu0 %285
          %vm288 = vcmask 261120
          %v290 = vsel %vm288, %v252, 0
          %v293 = vsel %vm288, %v253, 0
          %v296 = vsel %vm288, %v254, 0
          %v299 = vsel %vm288, %v255, 0
          %301 = vmatprep.subr.mxu0 %v257
          %302 = vmatpush1.msra.mxu0 %v256
          %303 = vmatprep.subr.mxu0 %v259
          %304 = vmatpush1.msra.mxu0 %v258
          %305 = vmatprep.subr.mxu0 %v261
          %306 = vmatpush1.msra.mxu0 %v260
          %307 = vmatprep.subr.mxu0 %v263
          %308 = vmatpush1.msra.mxu0 %v262
          %309 = vmatprep.subr.mxu0 0.0
          %310 = vmatpush1.msra.mxu0 0.0
          %311 = vmatprep.subr.mxu0 0.0
          %312 = vmatpush1.msra.mxu0 0.0
          %313 = vmatprep.subr.mxu0 0.0
          %314 = vmatpush1.msra.mxu0 0.0
          %315 = vmatprep.subr.mxu0 0.0
          %316 = vmatpush1.msra.mxu0 0.0
          %317 = vmatprep.subr.mxu0 0.0
          %318 = vmatpush1.msra.mxu0 0.0
          %319 = vmatprep.subr.mxu0 0.0
          %320 = vmatpush1.msra.mxu0 0.0
          %321 = vmatprep.subr.mxu0 0.0
          %322 = vmatpush1.msra.mxu0 0.0
          %323 = vmatprep.subr.mxu0 0.0
          %324 = vmatpush1.msra.mxu0 0.0
          %325 = vmatprep.subr.mxu0 0.0
          %326 = vmatpush1.msra.mxu0 0.0
          %327 = vmatprep.subr.mxu0 0.0
          %328 = vmatpush1.msra.mxu0 0.0
          %329 = vmatprep.subr.mxu0 0.0
          %330 = vmatpush1.msra.mxu0 0.0
          %331 = vmatprep.subr.mxu0 0.0
          %332 = vmatpush1.msra.mxu0 0.0
          %333 = vmatprep.subr.mxu0 0.0
          %334 = vmatpush1.msra.mxu0 0.0
          %335 = vmatprep.subr.mxu0 0.0
          %336 = vmatpush1.msra.mxu0 0.0
          %337 = vmatprep.subr.mxu0 0.0
          %338 = vmatpush1.msra.mxu0 0.0
          %339 = vmatprep.subr.mxu0 0.0
          %340 = vmatpush1.msra.mxu0 0.0
          %341 = vmatprep.subr.mxu0 0.0
          %342 = vmatpush1.msra.mxu0 0.0
          %343 = vmatprep.subr.mxu0 0.0
          %344 = vmatpush1.msra.mxu0 0.0
          %345 = vmatprep.subr.mxu0 0.0
          %346 = vmatpush1.msra.mxu0 0.0
          %347 = vmatprep.subr.mxu0 0.0
          %348 = vmatpush1.msra.mxu0 0.0
          %349 = vmatprep.subr.mxu0 0.0
          %350 = vmatpush1.msra.mxu0 0.0
          %351 = vmatprep.subr.mxu0 0.0
          %352 = vmatpush1.msra.mxu0 0.0
          %353 = vmatprep.subr.mxu0 0.0
          %354 = vmatpush1.msra.mxu0 0.0
          %355 = vmatprep.subr.mxu0 0.0
          %356 = vmatpush1.msra.mxu0 0.0
          %357 = vmatprep.subr.mxu0 0.0
          %358 = vmatpush1.msra.mxu0 0.0
          %359 = vmatprep.subr.mxu0 0.0
          %360 = vmatpush1.msra.mxu0 0.0
          %361 = vmatprep.subr.mxu0 0.0
          %362 = vmatpush1.msra.mxu0 0.0
          %363 = vmatprep.subr.mxu0 0.0
          %364 = vmatpush1.msra.mxu0 0.0
          %365 = vmatprep.mubr.f32.mxu0 0.0
          %366 = vmatmul.mubr.f32.gmra.mrb[0].mxu0 %v290
          %v367 = vpop.f32.mrb[0].mxu0
          %v368 = vadd.f32 %v271, %v367
          %v369 = vpop.f32.mrb[0].mxu0
          %v370 = vadd.f32 %v271, %v369
          %371 = vmatprep.mubr.f32.mxu0 0.0
          %372 = vmatmul.mubr.f32.gmra.mrb[0].mxu0 %v293
          %v373 = vpop.f32.mrb[0].mxu0
          %v374 = vadd.f32 %v276, %v373
          %v375 = vpop.f32.mrb[0].mxu0
          %v376 = vadd.f32 %v276, %v375
          %377 = vmatprep.mubr.f32.mxu0 0.0
          %378 = vmatmul.mubr.f32.gmra.mrb[0].mxu0 %v296
          %v379 = vpop.f32.mrb[0].mxu0
          %v380 = vadd.f32 %v281, %v379
          %v381 = vpop.f32.mrb[0].mxu0
          %v382 = vadd.f32 %v281, %v381
          %383 = vmatprep.mubr.f32.mxu0 0.0
          %384 = vmatmul.mubr.f32.gmra.mrb[0].mxu0 %v299
          %v385 = vpop.f32.mrb[0].mxu0
          %v386 = vadd.f32 %v286, %v385
          %v387 = vpop.f32.mrb[0].mxu0
          %v388 = vadd.f32 %v286, %v387
          %389 = vdwg.mxu0
          %v390 = vmax.f32 %v368, 0.0
          %v391 = vmax.f32 %v370, 0.0
          %v392 = vmax.f32 %v374, 0.0
          %v393 = vmax.f32 %v376, 0.0
          %v394 = vmax.f32 %v380, 0.0
          %v395 = vmax.f32 %v382, 0.0
          %v396 = vmax.f32 %v386, 0.0
          %v397 = vmax.f32 %v388, 0.0
          %v398 = vld [vmem:[%s3] sm:$0xff]
          %v399 = vld [vmem:[%s3 + $0x8] sm:$0xff]
          %v400 = vld [vmem:[%s4] sm:$0xff]
          %v401 = vld [vmem:[%s4 + $0x8] sm:$0xff]
          %403 = vset.pattern.permute.xlu0 0
          %404 = vperm.xlu0 %403, %v400
          %v405 = vpop.permute.xlu0 %404
          %408 = vset.pattern.permute.xlu0 0
          %409 = vperm.xlu0 %408, %v401
          %v410 = vpop.permute.xlu0 %409
          %v413 = vsel %vm288, %v398, 0
          %v416 = vsel %vm288, %v399, 0
          %418 = vmatprep.subr.mxu0 %v391
          %419 = vmatpush1.msra.mxu0 %v390
          %420 = vmatprep.subr.mxu0 %v393
          %421 = vmatpush1.msra.mxu0 %v392
          %422 = vmatprep.subr.mxu0 %v395
          %423 = vmatpush1.msra.mxu0 %v394
          %424 = vmatprep.subr.mxu0 %v397
          %425 = vmatpush1.msra.mxu0 %v396
          %426 = vmatprep.subr.mxu0 0.0
          %427 = vmatpush1.msra.mxu0 0.0
          %428 = vmatprep.subr.mxu0 0.0
          %429 = vmatpush1.msra.mxu0 0.0
          %430 = vmatprep.subr.mxu0 0.0
          %431 = vmatpush1.msra.mxu0 0.0
          %432 = vmatprep.subr.mxu0 0.0
          %433 = vmatpush1.msra.mxu0 0.0
          %434 = vmatprep.subr.mxu0 0.0
          %435 = vmatpush1.msra.mxu0 0.0
          %436 = vmatprep.subr.mxu0 0.0
          %437 = vmatpush1.msra.mxu0 0.0
          %438 = vmatprep.subr.mxu0 0.0
          %439 = vmatpush1.msra.mxu0 0.0
          %440 = vmatprep.subr.mxu0 0.0
          %441 = vmatpush1.msra.mxu0 0.0
          %442 = vmatprep.subr.mxu0 0.0
          %443 = vmatpush1.msra.mxu0 0.0
          %444 = vmatprep.subr.mxu0 0.0
          %445 = vmatpush1.msra.mxu0 0.0
          %446 = vmatprep.subr.mxu0 0.0
          %447 = vmatpush1.msra.mxu0 0.0
          %448 = vmatprep.subr.mxu0 0.0
          %449 = vmatpush1.msra.mxu0 0.0
          %450 = vmatprep.subr.mxu0 0.0
          %451 = vmatpush1.msra.mxu0 0.0
          %452 = vmatprep.subr.mxu0 0.0
          %453 = vmatpush1.msra.mxu0 0.0
          %454 = vmatprep.subr.mxu0 0.0
          %455 = vmatpush1.msra.mxu0 0.0
          %456 = vmatprep.subr.mxu0 0.0
          %457 = vmatpush1.msra.mxu0 0.0
          %458 = vmatprep.subr.mxu0 0.0
          %459 = vmatpush1.msra.mxu0 0.0
          %460 = vmatprep.subr.mxu0 0.0
          %461 = vmatpush1.msra.mxu0 0.0
          %462 = vmatprep.subr.mxu0 0.0
          %463 = vmatpush1.msra.mxu0 0.0
          %464 = vmatprep.subr.mxu0 0.0
          %465 = vmatpush1.msra.mxu0 0.0
          %466 = vmatprep.subr.mxu0 0.0
          %467 = vmatpush1.msra.mxu0 0.0
          %468 = vmatprep.subr.mxu0 0.0
          %469 = vmatpush1.msra.mxu0 0.0
          %470 = vmatprep.subr.mxu0 0.0
          %471 = vmatpush1.msra.mxu0 0.0
          %472 = vmatprep.subr.mxu0 0.0
          %473 = vmatpush1.msra.mxu0 0.0
          %474 = vmatprep.subr.mxu0 0.0
          %475 = vmatpush1.msra.mxu0 0.0
          %476 = vmatprep.subr.mxu0 0.0
          %477 = vmatpush1.msra.mxu0 0.0
          %478 = vmatprep.subr.mxu0 0.0
          %479 = vmatpush1.msra.mxu0 0.0
          %480 = vmatprep.subr.mxu0 0.0
          %481 = vmatpush1.msra.mxu0 0.0
          %482 = vmatprep.mubr.f32.mxu0 0.0
          %483 = vmatmul.mubr.f32.gmra.mrb[0].mxu0 %v413
          %v484 = vpop.f32.mrb[0].mxu0
          %v485 = vadd.f32 %v405, %v484
          %v486 = vpop.f32.mrb[0].mxu0
          %v487 = vadd.f32 %v405, %v486
          %488 = vmatprep.mubr.f32.mxu0 0.0
          %489 = vmatmul.mubr.f32.gmra.mrb[0].mxu0 %v416
          %v490 = vpop.f32.mrb[0].mxu0
          %v491 = vadd.f32 %v410, %v490
          %v492 = vpop.f32.mrb[0].mxu0
          %v493 = vadd.f32 %v410, %v492
          %494 = vdwg.mxu0
          %495 = vst [vmem:[#allocation2] sm:$0xff] %v485
          %496 = vst [vmem:[#allocation2 + $0x8] sm:$0xff] %v487
          %497 = vst [vmem:[#allocation2 + $0x10] sm:$0xff] %v491
          %498 = vst [vmem:[#allocation2 + $0x18] sm:$0xff] %v493
          %499 = vst [vmem:[#allocation3] sm:$0xff] %v485
          %500 = vst [vmem:[#allocation3 + $0x8] sm:$0xff] %v487
          %501 = vst [vmem:[#allocation3 + $0x10] sm:$0xff] %v491
          %502 = vst [vmem:[#allocation3 + $0x18] sm:$0xff] %v493
        $region56: #{tpu_custom_call.1} parent=43 // pred_fallthru
          _
        %v503 = vld [vmem:[#allocation3] sm:$0xff]
        %v504 = vld [vmem:[#allocation3 + $0x8] sm:$0xff]
        %v505 = vld [vmem:[#allocation3 + $0x10] sm:$0xff]
        %v506 = vld [vmem:[#allocation3 + $0x18] sm:$0xff]
        %v507 = vpack.c.bf16 %v505, %v503
        %v508 = vpack.c.bf16 %v506, %v504
        %v509 = vld [vmem:[#allocation7] sm:$0xff]
        %v510 = vld [vmem:[#allocation7 + $0x8] sm:$0xff]
        %v511 = vld [vmem:[#allocation7 + $0x10] sm:$0xff]
        %v512 = vld [vmem:[#allocation7 + $0x18] sm:$0xff]
        %v513 = vld [vmem:[#allocation7 + $0x20] sm:$0xff]
        %v514 = vld [vmem:[#allocation7 + $0x28] sm:$0xff]
        %v515 = vld [vmem:[#allocation7 + $0x30] sm:$0xff]
        %v516 = vld [vmem:[#allocation7 + $0x38] sm:$0xff]
        %v517 = vld [vmem:[#allocation7 + $0x40] sm:$0xff]
        %v518 = vld [vmem:[#allocation7 + $0x48] sm:$0xff]
        %v519 = vld [vmem:[#allocation7 + $0x50] sm:$0xff]
        %v520 = vld [vmem:[#allocation7 + $0x58] sm:$0xff]
        %v521 = vld [vmem:[#allocation7 + $0x60] sm:$0xff]
        %v522 = vld [vmem:[#allocation7 + $0x68] sm:$0xff]
        %v523 = vld [vmem:[#allocation7 + $0x70] sm:$0xff]
        %v524 = vld [vmem:[#allocation7 + $0x78] sm:$0xff]
        %v525 = vld [vmem:[#allocation7 + $0x80] sm:$0xff]
        %v526 = vld [vmem:[#allocation7 + $0x88] sm:$0xff]
        %v527 = vld [vmem:[#allocation7 + $0x90] sm:$0xff]
        %v528 = vld [vmem:[#allocation7 + $0x98] sm:$0xff]
        %v529 = vld [vmem:[#allocation7 + $0xa0] sm:$0xff]
        %v530 = vld [vmem:[#allocation7 + $0xa8] sm:$0xff]
        %v531 = vld [vmem:[#allocation7 + $0xb0] sm:$0xff]
        %v532 = vld [vmem:[#allocation7 + $0xb8] sm:$0xff]
        %v533 = vld [vmem:[#allocation7 + $0xc0] sm:$0xff]
        %v534 = vld [vmem:[#allocation7 + $0xc8] sm:$0xff]
        %v535 = vld [vmem:[#allocation7 + $0xd0] sm:$0xff]
        %v536 = vld [vmem:[#allocation7 + $0xd8] sm:$0xff]
        %v537 = vld [vmem:[#allocation7 + $0xe0] sm:$0xff]
        %v538 = vld [vmem:[#allocation7 + $0xe8] sm:$0xff]
        %v539 = vld [vmem:[#allocation7 + $0xf0] sm:$0xff]
        %v540 = vld [vmem:[#allocation7 + $0xf8] sm:$0xff]
        %v541 = vld [vmem:[#allocation2] sm:$0xff]
        %v542 = vld [vmem:[#allocation2 + $0x8] sm:$0xff]
        %v543 = vld [vmem:[#allocation2 + $0x10] sm:$0xff]
        %v544 = vld [vmem:[#allocation2 + $0x18] sm:$0xff]
        %v545 = vmul.f32 %v541, 0.1
        %v546 = vmul.f32 %v542, 0.1
        %v547 = vmul.f32 %v543, 0.1
        %v548 = vmul.f32 %v544, 0.1
        %v581 = vunpack.c.l.b16 %v509
        %v582 = vunpack.c.h.b16 %v509
        %v583 = vunpack.c.l.b16 %v510
        %v584 = vunpack.c.h.b16 %v510
        %v585 = vunpack.c.l.b16 %v511
        %v586 = vunpack.c.h.b16 %v511
        %v587 = vunpack.c.l.b16 %v512
        %v588 = vunpack.c.h.b16 %v512
        %v589 = vunpack.c.l.b16 %v513
        %v590 = vunpack.c.h.b16 %v513
        %v591 = vunpack.c.l.b16 %v514
        %v592 = vunpack.c.h.b16 %v514
        %v593 = vunpack.c.l.b16 %v515
        %v594 = vunpack.c.h.b16 %v515
        %v595 = vunpack.c.l.b16 %v516
        %v596 = vunpack.c.h.b16 %v516
        %v597 = vunpack.c.l.b16 %v517
        %v598 = vunpack.c.h.b16 %v517
        %v599 = vunpack.c.l.b16 %v518
        %v600 = vunpack.c.h.b16 %v518
        %v601 = vunpack.c.l.b16 %v519
        %v602 = vunpack.c.h.b16 %v519
        %v603 = vunpack.c.l.b16 %v520
        %v604 = vunpack.c.h.b16 %v520
        %v605 = vunpack.c.l.b16 %v521
        %v606 = vunpack.c.h.b16 %v521
        %v607 = vunpack.c.l.b16 %v522
        %v608 = vunpack.c.h.b16 %v522
        %v609 = vunpack.c.l.b16 %v523
        %v610 = vunpack.c.h.b16 %v523
        %v611 = vunpack.c.l.b16 %v524
        %v612 = vunpack.c.h.b16 %v524
        %v613 = vunpack.c.l.b16 %v525
        %v614 = vunpack.c.h.b16 %v525
        %v615 = vunpack.c.l.b16 %v526
        %v616 = vunpack.c.h.b16 %v526
        %v617 = vunpack.c.l.b16 %v527
        %v618 = vunpack.c.h.b16 %v527
        %v619 = vunpack.c.l.b16 %v528
        %v620 = vunpack.c.h.b16 %v528
        %v621 = vunpack.c.l.b16 %v529
        %v622 = vunpack.c.h.b16 %v529
        %v623 = vunpack.c.l.b16 %v530
        %v624 = vunpack.c.h.b16 %v530
        %v625 = vunpack.c.l.b16 %v531
        %v626 = vunpack.c.h.b16 %v531
        %v627 = vunpack.c.l.b16 %v532
        %v628 = vunpack.c.h.b16 %v532
        %v629 = vunpack.c.l.b16 %v533
        %v630 = vunpack.c.h.b16 %v533
        %v631 = vunpack.c.l.b16 %v534
        %v632 = vunpack.c.h.b16 %v534
        %v633 = vunpack.c.l.b16 %v535
        %v634 = vunpack.c.h.b16 %v535
        %v635 = vunpack.c.l.b16 %v536
        %v636 = vunpack.c.h.b16 %v536
        %v637 = vunpack.c.l.b16 %v537
        %v638 = vunpack.c.h.b16 %v537
        %v639 = vunpack.c.l.b16 %v538
        %v640 = vunpack.c.h.b16 %v538
        %v641 = vunpack.c.l.b16 %v539
        %v642 = vunpack.c.h.b16 %v539
        %v643 = vunpack.c.l.b16 %v540
        %v644 = vunpack.c.h.b16 %v540
        %v645 = vpack.c.b16 %v583, %v581
        %v646 = vpack.c.b16 %v584, %v582
        %v647 = vpack.c.b16 %v587, %v585
        %v648 = vpack.c.b16 %v588, %v586
        %v649 = vpack.c.b16 %v591, %v589
        %v650 = vpack.c.b16 %v592, %v590
        %v651 = vpack.c.b16 %v595, %v593
        %v652 = vpack.c.b16 %v596, %v594
        %v653 = vpack.c.b16 %v599, %v597
        %v654 = vpack.c.b16 %v600, %v598
        %v655 = vpack.c.b16 %v603, %v601
        %v656 = vpack.c.b16 %v604, %v602
        %v657 = vpack.c.b16 %v607, %v605
        %v658 = vpack.c.b16 %v608, %v606
        %v659 = vpack.c.b16 %v611, %v609
        %v660 = vpack.c.b16 %v612, %v610
        %v661 = vpack.c.b16 %v615, %v613
        %v662 = vpack.c.b16 %v616, %v614
        %v663 = vpack.c.b16 %v619, %v617
        %v664 = vpack.c.b16 %v620, %v618
        %v665 = vpack.c.b16 %v623, %v621
        %v666 = vpack.c.b16 %v624, %v622
        %v667 = vpack.c.b16 %v627, %v625
        %v668 = vpack.c.b16 %v628, %v626
        %v669 = vpack.c.b16 %v631, %v629
        %v670 = vpack.c.b16 %v632, %v630
        %v671 = vpack.c.b16 %v635, %v633
        %v672 = vpack.c.b16 %v636, %v634
        %v673 = vpack.c.b16 %v639, %v637
        %v674 = vpack.c.b16 %v640, %v638
        %v675 = vpack.c.b16 %v643, %v641
        %v676 = vpack.c.b16 %v644, %v642
        %709 = vmatprep.subr.bf16.mxu0 %v646
        %710 = vmatpush1.bf16.msra.mxu0 %v645
        %711 = vmatprep.subr.bf16.mxu0 %v648
        %712 = vmatpush1.bf16.msra.mxu0 %v647
        %713 = vmatprep.subr.bf16.mxu0 %v650
        %714 = vmatpush1.bf16.msra.mxu0 %v649
        %715 = vmatprep.subr.bf16.mxu0 %v652
        %716 = vmatpush1.bf16.msra.mxu0 %v651
        %717 = vmatprep.subr.bf16.mxu0 %v654
        %718 = vmatpush1.bf16.msra.mxu0 %v653
        %719 = vmatprep.subr.bf16.mxu0 %v656
        %720 = vmatpush1.bf16.msra.mxu0 %v655
        %721 = vmatprep.subr.bf16.mxu0 %v658
        %722 = vmatpush1.bf16.msra.mxu0 %v657
        %723 = vmatprep.subr.bf16.mxu0 %v660
        %724 = vmatpush1.bf16.msra.mxu0 %v659
        %725 = vmatprep.subr.bf16.mxu0 %v662
        %726 = vmatpush1.bf16.msra.mxu0 %v661
        %727 = vmatprep.subr.bf16.mxu0 %v664
        %728 = vmatpush1.bf16.msra.mxu0 %v663
        %729 = vmatprep.subr.bf16.mxu0 %v666
        %730 = vmatpush1.bf16.msra.mxu0 %v665
        %731 = vmatprep.subr.bf16.mxu0 %v668
        %732 = vmatpush1.bf16.msra.mxu0 %v667
        %733 = vmatprep.subr.bf16.mxu0 %v670
        %734 = vmatpush1.bf16.msra.mxu0 %v669
        %735 = vmatprep.subr.bf16.mxu0 %v672
        %736 = vmatpush1.bf16.msra.mxu0 %v671
        %737 = vmatprep.subr.bf16.mxu0 %v674
        %738 = vmatpush1.bf16.msra.mxu0 %v673
        %739 = vmatprep.subr.bf16.mxu0 %v676
        %740 = vmatpush1.bf16.msra.mxu0 %v675
        %741 = vmatprep.mubr.bf16.mxu0 %v508
        %742 = vmatmul.mubr.bf16.gmra.mrb[0].mxu0 %v507
        %v743 = vpop.f32.mrb[0].mxu0
        %v744 = vadd.f32 %v545, %v743
        %v745 = vpop.f32.mrb[0].mxu0
        %v746 = vadd.f32 %v546, %v745
        %v747 = vpop.f32.mrb[0].mxu0
        %v748 = vadd.f32 %v547, %v747
        %v749 = vpop.f32.mrb[0].mxu0
        %v750 = vadd.f32 %v548, %v749
        %751 = vdwg.mxu0
        %752 = vst [vmem:[#allocation3] sm:$0xff] %v744
        %753 = vst [vmem:[#allocation3 + $0x8] sm:$0xff] %v746
        %754 = vst [vmem:[#allocation3 + $0x10] sm:$0xff] %v748
        %755 = vst [vmem:[#allocation3 + $0x18] sm:$0xff] %v750
        %p756 = scmp.eq.s32.totalorder %s20, 9
        // Predicated region
        $region57: #{tpu_custom_call.1} parent=43 // pred_check
          %p757 = pneg %p756
        $region58: #{tpu_custom_call.1} parent=43 // pred_check_branch
          %759 = sbr.rel (%p757) target = $region60
        $region59: #{tpu_custom_call.1} parent=43 // pred_region
          %v760 = vld [vmem:[#allocation3] sm:$0xff]
          %v761 = vld [vmem:[#allocation3 + $0x8] sm:$0xff]
          %v762 = vld [vmem:[#allocation3 + $0x10] sm:$0xff]
          %v763 = vld [vmem:[#allocation3 + $0x18] sm:$0xff]
          %v764 = vmax.f32 %v760, %v762
          %v765 = vrot.slane %v764, 4
          %v766 = vmax.f32 %v764, %v765
          %v767 = vrot.slane %v766, 2
          %v768 = vmax.f32 %v766, %v767
          %v769 = vrot.slane %v768, 1
          %v770 = vmax.f32 %v768, %v769
          %v771 = vmax.f32 %v761, %v763
          %v772 = vrot.slane %v771, 4
          %v773 = vmax.f32 %v771, %v772
          %v774 = vrot.slane %v773, 2
          %v775 = vmax.f32 %v773, %v774
          %v776 = vrot.slane %v775, 1
          %v777 = vmax.f32 %v775, %v776
          %v778 = vsub.f32 %v760, %v770
          %v779 = vsub.f32 %v761, %v777
          %v780 = vsub.f32 %v762, %v770
          %v781 = vsub.f32 %v763, %v777
          %v782 = vmul.f32 %v778, 1.442695
          %v783 = vpow.pop %v782
          %v784 = vmul.f32 %v779, 1.442695
          %v785 = vpow.pop %v784
          %v786 = vmul.f32 %v780, 1.442695
          %v787 = vpow.pop %v786
          %v788 = vmul.f32 %v781, 1.442695
          %v789 = vpow.pop %v788
          %v790 = vadd.f32 %v783, %v787
          %v791 = vrot.slane %v790, 4
          %v792 = vadd.f32 %v790, %v791
          %v793 = vrot.slane %v792, 2
          %v794 = vadd.f32 %v792, %v793
          %v795 = vrot.slane %v794, 1
          %v796 = vadd.f32 %v794, %v795
          %v797 = vadd.f32 %v785, %v789
          %v798 = vrot.slane %v797, 4
          %v799 = vadd.f32 %v797, %v798
          %v800 = vrot.slane %v799, 2
          %v801 = vadd.f32 %v799, %v800
          %v802 = vrot.slane %v801, 1
          %v803 = vadd.f32 %v801, %v802
          %v804 = vlog2.pop %v796
          %v805 = vmul.f32 %v804, 0.6931472
          %v806 = vlog2.pop %v803
          %v807 = vmul.f32 %v806, 0.6931472
          %v808 = vsub.f32 %v778, %v805
          %v809 = vsub.f32 %v779, %v807
          %v810 = vsub.f32 %v780, %v805
          %v811 = vsub.f32 %v781, %v807
          %812 = vst [vmem:[#allocation9] sm:$0xff] %v808
          %813 = vst [vmem:[#allocation9 + $0x8] sm:$0xff] %v809
          %814 = vst [vmem:[#allocation9 + $0x10] sm:$0xff] %v810
          %815 = vst [vmem:[#allocation9 + $0x18] sm:$0xff] %v811
        $region60: #{tpu_custom_call.1} parent=43 // pred_fallthru
          _
        // Predicated region
        $region61: #{tpu_custom_call.1} parent=43 // pred_check
          %p816 = pneg %p159
        $region62: #{tpu_custom_call.1} parent=43 // pred_check_branch
          %818 = sbr.rel (%p816) target = $region64
        $region63: #{tpu_custom_call.1} parent=43 // pred_region
          %s820 = ssub.s32 512, 512
          %821 = vsyncadd [#allocation6], %s820
          %s822 = sshll.u32 [#allocation9], 4
          %s823 = int_to_ptr.vmem [resolvable:$true] %s822
          %828 = dma.vmem_to_hbm [thread:$0]  %s823, 512, %s6, [#allocation6], 256, 256, 16
        $region64: #{tpu_custom_call.1} parent=43 // pred_fallthru
          _
        // Predicated region
        $region65: #{tpu_custom_call.1} parent=43 // pred_check
          %p829 = pneg %p159
        $region66: #{tpu_custom_call.1} parent=43 // pred_check_branch
          %831 = sbr.rel (%p829) target = $region68
        $region67: #{tpu_custom_call.1} parent=43 // pred_region
          %832 = dma.done [#allocation6], 512
        $region68: #{tpu_custom_call.1} parent=43 // pred_fallthru
          _
      $region44: #{tpu_custom_call.1} parent=5 // pred_fallthru
        _
      %p833 = scmp.le.s32.totalorder 2, %s15
      // Predicated region
      $region69: #{tpu_custom_call.1} parent=5 // pred_check
        %p834 = pneg %p833
      $region70: #{tpu_custom_call.1} parent=5 // pred_check_branch
        %836 = sbr.rel (%p834) target = $region72
      $region71: #{tpu_custom_call.1} parent=5 // pred_region
        %s837 = ssub.s32 %s15, 2
      $region72: #{tpu_custom_call.1} parent=5 // pred_fallthru
        _
    $region6: #{tpu_custom_call.1} parent=1 // loop_footer
      %s19 = sadd.s32 1, %s15
    $region7: #{tpu_custom_call.1} parent=1 // loop_footer_branch
      %14 = sbr.rel target = $region3
    $region8: #{tpu_custom_call.1} parent=1 // loop_exit
      _
    %838 = vsyncpa [#allocation5], 1
    %s839 = scalar_lea.sflag [#allocation5], 1
    %840 = vsyncpa %s839, 1
    %841 = vsyncpa [#allocation8], 1
    %842 = vsyncpa [#allocation6], 1
    %s843 = scalar_lea.sflag [#allocation6], 1
    %844 = vsyncpa %s843, 1

</llo_original>
